<compile_context>
chip_gen: v7x
topology: tpu7x:2x2x1
jax: 0.10.0
libtpu: 0.0.40
codegen_flags: <defaults>
</compile_context>

<pallas_src>
import jax
import jax.numpy as jnp
from jax.experimental import pallas as pl
from jax.experimental.pallas import tpu as pltpu


def _conv_classifier_kernel(x_ref, m1_ref, b1_ref, m2_ref, b2_ref,
                            wfc1_ref, bfc1_ref, wfc2_ref, bfc2_ref, o_ref):
    # bf16 operands on the MXU, f32 accumulation, bias + ReLU in f32.
    x = x_ref[...].astype(jnp.bfloat16)                                # (TB, L)

    # Conv1d(1, 16, k=3, pad=1) + ReLU: one banded matmul. Columns: l*16 + c.
    h1 = jnp.dot(x, m1_ref[...], preferred_element_type=jnp.float32) + b1_ref[...]
    h1 = jnp.maximum(h1, 0.0).astype(jnp.bfloat16)                     # (TB, 16L)

    # Conv1d(16, 32, k=3, pad=1) + ReLU: one banded matmul. Columns: l*32 + o.
    h2 = jnp.dot(h1, m2_ref[...], preferred_element_type=jnp.float32) + b2_ref[...]
    h2 = jnp.maximum(h2, 0.0).astype(jnp.bfloat16)                     # (TB, 32L)

    # Flatten already materialized; fc1 weight rows were permuted on the host.
    h3 = jnp.dot(h2, wfc1_ref[...], preferred_element_type=jnp.float32) + bfc1_ref[...]
    h3 = jnp.maximum(h3, 0.0).astype(jnp.bfloat16)                     # (TB, 128)

    # fc2 zero-padded to 128 lanes -> unmasked lane-dense output store.
    out = jnp.dot(h3, wfc2_ref[...], preferred_element_type=jnp.float32) + bfc2_ref[...]
    o_ref[...] = out.astype(o_ref.dtype)                               # (TB, 128)


def _round_up(n, m):
    return ((n + m - 1) // m) * m


def conv_classifier_forward(x, params, *, batch_tile=1024):
    """x: (B, L) float32. params: PyTorch-shaped weights. Returns (B, NC) f32."""
    W1, b1, W2, b2, Wf1, bf1, Wf2, bf2 = params
    B, L = x.shape
    NC = Wf2.shape[0]
    NC_PAD = max(128, _round_up(NC, 128))            # lane-dense output width

    # ---- host-side weight prep (plain JAX, done once) ----------------------
    # Conv1 as a banded (L, 16L) matrix: M1[l', l*16 + c] = W1[c, 0, l'-l+1].
    t1 = jnp.arange(L)[:, None, None] - jnp.arange(L)[None, :, None] + 1
    valid1 = (t1 >= 0) & (t1 <= 2)
    c_idx = jnp.arange(16)[None, None, :]
    w1k = W1[:, 0, :]                                                  # (16, 3)
    M1 = jnp.where(valid1, w1k[c_idx, jnp.clip(t1, 0, 2)], 0.0)
    M1 = M1.reshape(L, 16 * L).astype(jnp.bfloat16)
    b1t = jnp.tile(b1, L).reshape(1, 16 * L).astype(jnp.float32)       # [l*16+c] -> b1[c]

    # Conv2 as a banded (16L, 32L) matrix:
    #   M2[l'*16 + ci, l*32 + o] = W2[o, ci, l'-l+1].
    # TODO(synk): for very large input_dim, switch conv2 to 3 shifted-tap
    # matmuls to avoid the O(L^2) weight blow-up (see header note).
    lp = jnp.arange(L)[:, None, None, None]
    ci = jnp.arange(16)[None, :, None, None]
    l_ = jnp.arange(L)[None, None, :, None]
    o_ = jnp.arange(32)[None, None, None, :]
    t2 = lp - l_ + 1
    valid2 = (t2 >= 0) & (t2 <= 2)
    M2 = jnp.where(valid2, W2[o_, ci, jnp.clip(t2, 0, 2)], 0.0)
    M2 = M2.reshape(16 * L, 32 * L).astype(jnp.bfloat16)
    b2t = jnp.tile(b2, L).reshape(1, 32 * L).astype(jnp.float32)       # [l*32+o] -> b2[o]

    # PyTorch flatten index is c*L + l; our h2 columns are l*32 + c.
    # Wf1[k, c*L + l] -> Wf1_k[l*32 + c, k].
    Wf1_k = jnp.transpose(Wf1.reshape(128, 32, L), (2, 1, 0))
    Wf1_k = Wf1_k.reshape(32 * L, 128).astype(jnp.bfloat16)
    bf1_k = bf1.reshape(1, 128).astype(jnp.float32)
    # fc2 zero-padded to NC_PAD lanes.
    Wf2_k = jnp.zeros((128, NC_PAD), jnp.float32).at[:, :NC].set(jnp.transpose(Wf2))
    Wf2_k = Wf2_k.astype(jnp.bfloat16)
    bf2_k = jnp.zeros((1, NC_PAD), jnp.float32).at[:, :NC].set(bf2)

    # ---- batch-tile / grid selection ---------------------------------------
    batch_tile = max(8, _round_up(batch_tile, 8))
    if B <= 8:
        TB = B                                       # single full-array block
    else:
        # >=2 grid steps so both v7x TensorCores get work; TB multiple of 8.
        TB = min(batch_tile, _round_up(pl.cdiv(B, 2), 8))
    grid = (pl.cdiv(B, TB),)

    # Scoped-VMEM budget: f32 + bf16 activations, double-buffered I/O tiles,
    # (default double-buffered) bf16 weights / f32 biases, plus 2x headroom.
    f32b, bf16b = 4, 2
    act = TB * (16 * L + 32 * L + 128) * f32b
    act_bf = TB * (L + 16 * L + 32 * L + 128) * bf16b
    io = 2 * TB * L * f32b + 2 * TB * NC_PAD * f32b
    wts = 2 * ((L * 16 * L + 16 * L * 32 * L + 32 * L * 128 + 128 * NC_PAD) * bf16b
               + (16 * L + 32 * L + 128 + NC_PAD) * f32b)
    vmem_limit = int(min(max(2 * (act + act_bf + io + wts), 32 * 1024 * 1024),
                         64 * 1024 * 1024))

    def full(arr):
        # Constant index_map: fetched once, stays resident across grid steps.
        return pl.BlockSpec(arr.shape, lambda b: (0,) * arr.ndim)

    out = pl.pallas_call(
        _conv_classifier_kernel,
        out_shape=jax.ShapeDtypeStruct((B, NC_PAD), jnp.float32),
        grid=grid,
        in_specs=[
            pl.BlockSpec((TB, L), lambda b: (b, 0)),         # lane-dense input tile
            full(M1), full(b1t),
            full(M2), full(b2t),
            full(Wf1_k), full(bf1_k),
            full(Wf2_k), full(bf2_k),
        ],
        out_specs=pl.BlockSpec((TB, NC_PAD), lambda b: (b, 0)),  # lane-dense output
        compiler_params=pltpu.CompilerParams(
            dimension_semantics=("parallel",),               # batch tiles independent
            vmem_limit_bytes=vmem_limit),
    )(x, M1, b1t, M2, b2t, Wf1_k, bf1_k, Wf2_k, bf2_k)

    return out[:, :NC]                                       # (B, NC)


def _reference_forward(x, params):
    """Pure-JAX f32 reference matching the PyTorch module exactly."""
    W1, b1, W2, b2, Wf1, bf1, Wf2, bf2 = params
    B, L = x.shape
    xp = jnp.pad(x, ((0, 0), (1, 1)))                        # (B, L+2)
    taps1 = jnp.stack([xp[:, 0:L], xp[:, 1:L + 1], xp[:, 2:L + 2]], axis=-1)
    h1 = jnp.einsum('blt,ot->bol', taps1, W1[:, 0, :]) + b1[None, :, None]
    h1 = jnp.maximum(h1, 0.0)                                # (B, 16, L)
    h1p = jnp.pad(h1, ((0, 0), (0, 0), (1, 1)))
    taps2 = jnp.stack([h1p[:, :, 0:L], h1p[:, :, 1:L + 1], h1p[:, :, 2:L + 2]],
                      axis=-1)                               # (B, 16, L, 3)
    h2 = jnp.einsum('bilt,oit->bol', taps2, W2) + b2[None, :, None]
    h2 = jnp.maximum(h2, 0.0)                                # (B, 32, L)
    flat = h2.reshape(B, 32 * L)                             # PyTorch flatten order
    f1 = jnp.maximum(flat @ Wf1.T + bf1, 0.0)
    return f1 @ Wf2.T + bf2


def init_params(key, input_dim, num_classes=5):
    ks = jax.random.split(key, 8)
    s = 0.1
    W1 = s * jax.random.normal(ks[0], (16, 1, 3), jnp.float32)
    b1 = s * jax.random.normal(ks[1], (16,), jnp.float32)
    W2 = s * jax.random.normal(ks[2], (32, 16, 3), jnp.float32)
    b2 = s * jax.random.normal(ks[3], (32,), jnp.float32)
    Wf1 = s * jax.random.normal(ks[4], (128, 32 * input_dim), jnp.float32)
    bf1 = s * jax.random.normal(ks[5], (128,), jnp.float32)
    Wf2 = s * jax.random.normal(ks[6], (num_classes, 128), jnp.float32)
    bf2 = s * jax.random.normal(ks[7], (num_classes,), jnp.float32)
    return (W1, b1, W2, b2, Wf1, bf1, Wf2, bf2)


if __name__ == "__main__":
    B, INPUT_DIM, NUM_CLASSES = 2, 16, 5
    key = jax.random.PRNGKey(0)
    kx, kp = jax.random.split(key)
    x = jax.random.normal(kx, (B, INPUT_DIM), jnp.float32)
    params = init_params(kp, INPUT_DIM, NUM_CLASSES)

    out = conv_classifier_forward(x, params)
    out = jax.block_until_ready(out)

    ref = jax.block_until_ready(_reference_forward(x, params))
    assert out.shape == (B, NUM_CLASSES)
    # bf16 MXU operands (f32 accumulation) -> loosen tolerance vs f32 reference.
    assert jnp.allclose(out, ref, atol=2e-2, rtol=2e-2), (out, ref)

    print("KERNEL_OK")
</pallas_src>

<mosaic_0001>
module attributes {stable_mosaic.version = 11 : i64} {
  func.func @_conv_classifier_kernel(%arg0: i32, %arg1: memref<2x16xf32, #tpu.memory_space<vmem>>, %arg2: memref<16x256xbf16, #tpu.memory_space<vmem>>, %arg3: memref<1x256xf32, #tpu.memory_space<vmem>>, %arg4: memref<256x512xbf16, #tpu.memory_space<vmem>>, %arg5: memref<1x512xf32, #tpu.memory_space<vmem>>, %arg6: memref<512x128xbf16, #tpu.memory_space<vmem>>, %arg7: memref<1x128xf32, #tpu.memory_space<vmem>>, %arg8: memref<128x128xbf16, #tpu.memory_space<vmem>>, %arg9: memref<1x128xf32, #tpu.memory_space<vmem>>, %arg10: memref<2x128xf32, #tpu.memory_space<vmem>>) attributes {dimension_semantics = [#tpu.dimension_semantics<parallel>], iteration_bounds = array<i64: 1>, scalar_prefetch = 0 : i64, scratch_operands = 0 : i64, tpu.core_type = #tpu.core_type<tc>, window_params = [{transform_indices = @transform_0, window_bounds = array<i64: 2, 16>}, {pipeline_mode = #tpu.pipeline_mode<synchronous>, transform_indices = @transform_1, window_bounds = array<i64: 16, 256>}, {pipeline_mode = #tpu.pipeline_mode<synchronous>, transform_indices = @transform_2, window_bounds = array<i64: 1, 256>}, {pipeline_mode = #tpu.pipeline_mode<synchronous>, transform_indices = @transform_3, window_bounds = array<i64: 256, 512>}, {pipeline_mode = #tpu.pipeline_mode<synchronous>, transform_indices = @transform_4, window_bounds = array<i64: 1, 512>}, {pipeline_mode = #tpu.pipeline_mode<synchronous>, transform_indices = @transform_5, window_bounds = array<i64: 512, 128>}, {pipeline_mode = #tpu.pipeline_mode<synchronous>, transform_indices = @transform_6, window_bounds = array<i64: 1, 128>}, {pipeline_mode = #tpu.pipeline_mode<synchronous>, transform_indices = @transform_7, window_bounds = array<i64: 128, 128>}, {pipeline_mode = #tpu.pipeline_mode<synchronous>, transform_indices = @transform_8, window_bounds = array<i64: 1, 128>}, {transform_indices = @transform_9, window_bounds = array<i64: 2, 128>}]} {
    %c0 = arith.constant 0 : index
    %c0_0 = arith.constant 0 : index
    %0 = vector.load %arg1[%c0, %c0_0] : memref<2x16xf32, #tpu.memory_space<vmem>>, vector<2x16xf32>
    %1 = arith.truncf %0 : vector<2x16xf32> to vector<2x16xbf16>
    %c0_1 = arith.constant 0 : index
    %c0_2 = arith.constant 0 : index
    %2 = vector.load %arg2[%c0_1, %c0_2] : memref<16x256xbf16, #tpu.memory_space<vmem>>, vector<16x256xbf16>
    %cst = arith.constant dense<0.000000e+00> : vector<2x256xf32>
    %3 = tpu.matmul %1, %2, %cst {dimension_numbers = #tpu.dot_dimension_numbers<[1], [0], [0], [1], [0, 0, 1, 1], [], []>} : vector<2x16xbf16>, vector<16x256xbf16>, vector<2x256xf32> -> vector<2x256xf32>
    %c0_3 = arith.constant 0 : index
    %c0_4 = arith.constant 0 : index
    %4 = vector.load %arg3[%c0_3, %c0_4] : memref<1x256xf32, #tpu.memory_space<vmem>>, vector<1x256xf32>
    %5 = vector.broadcast %4 : vector<1x256xf32> to vector<2x256xf32>
    %6 = arith.addf %3, %5 : vector<2x256xf32>
    %cst_5 = arith.constant 0.000000e+00 : f32
    %7 = vector.broadcast %cst_5 : f32 to vector<2x256xf32>
    %8 = arith.maximumf %6, %7 : vector<2x256xf32>
    %9 = arith.truncf %8 : vector<2x256xf32> to vector<2x256xbf16>
    %c0_6 = arith.constant 0 : index
    %c0_7 = arith.constant 0 : index
    %10 = vector.load %arg4[%c0_6, %c0_7] : memref<256x512xbf16, #tpu.memory_space<vmem>>, vector<256x512xbf16>
    %cst_8 = arith.constant dense<0.000000e+00> : vector<2x512xf32>
    %11 = tpu.matmul %9, %10, %cst_8 {dimension_numbers = #tpu.dot_dimension_numbers<[1], [0], [0], [1], [0, 0, 1, 1], [], []>} : vector<2x256xbf16>, vector<256x512xbf16>, vector<2x512xf32> -> vector<2x512xf32>
    %c0_9 = arith.constant 0 : index
    %c0_10 = arith.constant 0 : index
    %12 = vector.load %arg5[%c0_9, %c0_10] : memref<1x512xf32, #tpu.memory_space<vmem>>, vector<1x512xf32>
    %13 = vector.broadcast %12 : vector<1x512xf32> to vector<2x512xf32>
    %14 = arith.addf %11, %13 : vector<2x512xf32>
    %cst_11 = arith.constant 0.000000e+00 : f32
    %15 = vector.broadcast %cst_11 : f32 to vector<2x512xf32>
    %16 = arith.maximumf %14, %15 : vector<2x512xf32>
    %17 = arith.truncf %16 : vector<2x512xf32> to vector<2x512xbf16>
    %c0_12 = arith.constant 0 : index
    %c0_13 = arith.constant 0 : index
    %18 = vector.load %arg6[%c0_12, %c0_13] : memref<512x128xbf16, #tpu.memory_space<vmem>>, vector<512x128xbf16>
    %cst_14 = arith.constant dense<0.000000e+00> : vector<2x128xf32>
    %19 = tpu.matmul %17, %18, %cst_14 {dimension_numbers = #tpu.dot_dimension_numbers<[1], [0], [0], [1], [0, 0, 1, 1], [], []>} : vector<2x512xbf16>, vector<512x128xbf16>, vector<2x128xf32> -> vector<2x128xf32>
    %c0_15 = arith.constant 0 : index
    %c0_16 = arith.constant 0 : index
    %20 = vector.load %arg7[%c0_15, %c0_16] : memref<1x128xf32, #tpu.memory_space<vmem>>, vector<1x128xf32>
    %21 = vector.broadcast %20 : vector<1x128xf32> to vector<2x128xf32>
    %22 = arith.addf %19, %21 : vector<2x128xf32>
    %cst_17 = arith.constant 0.000000e+00 : f32
    %23 = vector.broadcast %cst_17 : f32 to vector<2x128xf32>
    %24 = arith.maximumf %22, %23 : vector<2x128xf32>
    %25 = arith.truncf %24 : vector<2x128xf32> to vector<2x128xbf16>
    %c0_18 = arith.constant 0 : index
    %c0_19 = arith.constant 0 : index
    %26 = vector.load %arg8[%c0_18, %c0_19] : memref<128x128xbf16, #tpu.memory_space<vmem>>, vector<128x128xbf16>
    %cst_20 = arith.constant dense<0.000000e+00> : vector<2x128xf32>
    %27 = tpu.matmul %25, %26, %cst_20 {dimension_numbers = #tpu.dot_dimension_numbers<[1], [0], [0], [1], [0, 0, 1, 1], [], []>} : vector<2x128xbf16>, vector<128x128xbf16>, vector<2x128xf32> -> vector<2x128xf32>
    %c0_21 = arith.constant 0 : index
    %c0_22 = arith.constant 0 : index
    %28 = vector.load %arg9[%c0_21, %c0_22] : memref<1x128xf32, #tpu.memory_space<vmem>>, vector<1x128xf32>
    %29 = vector.broadcast %28 : vector<1x128xf32> to vector<2x128xf32>
    %30 = arith.addf %27, %29 : vector<2x128xf32>
    %c0_23 = arith.constant 0 : index
    %c0_24 = arith.constant 0 : index
    %31 = vector.load %arg10[%c0_23, %c0_24] : memref<2x128xf32, #tpu.memory_space<vmem>>, vector<2x128xf32>
    tpu.vector_store %arg10[%c0_23, %c0_24], %30 {strides = array<i32>} : memref<2x128xf32, #tpu.memory_space<vmem>>, vector<2x128xf32>,
    return
  }
  func.func @transform_0(%arg0: i32) -> (i32, i32) {
    %c0_i32 = arith.constant 0 : i32
    %c0_i32_0 = arith.constant 0 : i32
    return %arg0, %c0_i32 : i32, i32
  }
  func.func @transform_1(%arg0: i32) -> (i32, i32) {
    %c0_i32 = arith.constant 0 : i32
    %c0_i32_0 = arith.constant 0 : i32
    %c0_i32_1 = arith.constant 0 : i32
    return %c0_i32, %c0_i32_0 : i32, i32
  }
  func.func @transform_2(%arg0: i32) -> (i32, i32) {
    %c0_i32 = arith.constant 0 : i32
    %c0_i32_0 = arith.constant 0 : i32
    %c0_i32_1 = arith.constant 0 : i32
    return %c0_i32, %c0_i32_0 : i32, i32
  }
  func.func @transform_3(%arg0: i32) -> (i32, i32) {
    %c0_i32 = arith.constant 0 : i32
    %c0_i32_0 = arith.constant 0 : i32
    %c0_i32_1 = arith.constant 0 : i32
    return %c0_i32, %c0_i32_0 : i32, i32
  }
  func.func @transform_4(%arg0: i32) -> (i32, i32) {
    %c0_i32 = arith.constant 0 : i32
    %c0_i32_0 = arith.constant 0 : i32
    %c0_i32_1 = arith.constant 0 : i32
    return %c0_i32, %c0_i32_0 : i32, i32
  }
  func.func @transform_5(%arg0: i32) -> (i32, i32) {
    %c0_i32 = arith.constant 0 : i32
    %c0_i32_0 = arith.constant 0 : i32
    %c0_i32_1 = arith.constant 0 : i32
    return %c0_i32, %c0_i32_0 : i32, i32
  }
  func.func @transform_6(%arg0: i32) -> (i32, i32) {
    %c0_i32 = arith.constant 0 : i32
    %c0_i32_0 = arith.constant 0 : i32
    %c0_i32_1 = arith.constant 0 : i32
    return %c0_i32, %c0_i32_0 : i32, i32
  }
  func.func @transform_7(%arg0: i32) -> (i32, i32) {
    %c0_i32 = arith.constant 0 : i32
    %c0_i32_0 = arith.constant 0 : i32
    %c0_i32_1 = arith.constant 0 : i32
    return %c0_i32, %c0_i32_0 : i32, i32
  }
  func.func @transform_8(%arg0: i32) -> (i32, i32) {
    %c0_i32 = arith.constant 0 : i32
    %c0_i32_0 = arith.constant 0 : i32
    %c0_i32_1 = arith.constant 0 : i32
    return %c0_i32, %c0_i32_0 : i32, i32
  }
  func.func @transform_9(%arg0: i32) -> (i32, i32) {
    %c0_i32 = arith.constant 0 : i32
    %c0_i32_0 = arith.constant 0 : i32
    return %arg0, %c0_i32 : i32, i32
  }
}

</mosaic_0001>

<llo_original>
// kernel: tpu_custom_call.1
$region0: #{tpu_custom_call.1}
  #allocation0 [shape = 'u32[]', space=smem, size = 0x4, offset = 0x4, fixed_abs, tag = 'smem constant byte address 0x4 - core index']
  #allocation1 [shape = 'u32[144,128]{1,0:T(1,128)}', space=vmem, size = 0x12000, scoped, tag = 'internal scratch']
  %s0 = inlined_call_operand.hbm [shape: f32[2,16], index: 0, kind: input, shape index: {}]
  %s1 = inlined_call_operand.hbm [shape: bf16[16,256], index: 1, kind: input, shape index: {}]
  %s2 = inlined_call_operand.vmem [shape: f32[1,256], index: 2, kind: input, shape index: {}]
  %s3 = inlined_call_operand.hbm [shape: bf16[256,512], index: 3, kind: input, shape index: {}]
  %s4 = inlined_call_operand.vmem [shape: f32[1,512], index: 4, kind: input, shape index: {}]
  %s5 = inlined_call_operand.hbm [shape: bf16[512,128], index: 5, kind: input, shape index: {}]
  %s6 = inlined_call_operand.vmem [shape: f32[1,128], index: 6, kind: input, shape index: {}]
  %s7 = inlined_call_operand.hbm [shape: bf16[128,128], index: 7, kind: input, shape index: {}]
  %s8 = inlined_call_operand.vmem [shape: f32[1,128], index: 8, kind: input, shape index: {}]
  %s9 = inlined_call_operand.hbm [shape: f32[2,128], index: 9, kind: output, shape index: {}]
  %s10 = sld [smem:[#allocation0]]
  $region66: #{tpu_custom_call.1} parent=0
    _
  %s12 = ssub.s32 1, %s10
  %s13 = scalar_select 0, %s12, %s10
  $region1: #{tpu_custom_call.1} parent=0
    #allocation2 [shape = 'u8[1024]{0}', space=vmem, size = 0x400, scoped, tag = 'input window, operand 0, single buffered']
    #allocation3 [shape = 's32[1]{0}', space=sflag, size = 0x4, scoped, tag = 'scoped memory for tpu_custom_call.1']
    #allocation4 [shape = 's32[1]{0}', space=sflag, size = 0x4, scoped, tag = 'scoped memory for tpu_custom_call.1']
    #allocation5 [shape = 'u8[8192]{0}', space=vmem, size = 0x2000, scoped, tag = 'input window, operand 1, single buffered']
    #allocation6 [shape = 's32[1]{0}', space=sflag, size = 0x4, scoped, tag = 'scoped memory for tpu_custom_call.1']
    #allocation7 [shape = 'u8[262144]{0}', space=vmem, size = 0x40000, scoped, tag = 'input window, operand 3, single buffered']
    #allocation8 [shape = 'u8[131072]{0}', space=vmem, size = 0x20000, scoped, tag = 'input window, operand 5, single buffered']
    #allocation9 [shape = 's32[1]{0}', space=sflag, size = 0x4, scoped, tag = 'scoped memory for tpu_custom_call.1']
    #allocation10 [shape = 'u8[32768]{0}', space=vmem, size = 0x8000, scoped, tag = 'input window, operand 7, single buffered']
    #allocation11 [shape = 'u8[1024]{0}', space=vmem, size = 0x400, scoped, tag = 'output window, operand 0, single buffered']
    %14 = vsyncpa [#allocation3], 0
    %15 = vsyncpa [#allocation6], 0
    %16 = vsyncpa [#allocation9], 0
    %17 = vsyncpa [#allocation4], 0
    // Predicated region
    $region2: #{tpu_custom_call.1} parent=1 // pred_check
      _
    $region3: #{tpu_custom_call.1} parent=1 // pred_check_branch
      %19 = sbr.rel (0) target = $region5
    $region4: #{tpu_custom_call.1} parent=1 // pred_region
      %s21 = ssub.s32 32, 32
      %22 = vsyncadd [#allocation3], %s21
      %s24 = sshll.u32 [#allocation2], 4
      %s25 = int_to_ptr.vmem [resolvable:$true] %s24
      %27 = dma.hbm_to_vmem [thread:$0]  %s0, 32, %s25, [#allocation3]
    $region5: #{tpu_custom_call.1} parent=1 // pred_fallthru
      _
    // Predicated region
    $region6: #{tpu_custom_call.1} parent=1 // pred_check
      _
    $region7: #{tpu_custom_call.1} parent=1 // pred_check_branch
      %29 = sbr.rel (0) target = $region9
    $region8: #{tpu_custom_call.1} parent=1 // pred_region
      %s31 = ssub.s32 256, 256
      %32 = vsyncadd [#allocation6], %s31
      %s33 = sshll.u32 [#allocation5], 4
      %s34 = int_to_ptr.vmem [resolvable:$true] %s33
      %39 = dma.hbm_to_vmem [thread:$0]  %s1, 256, %s34, [#allocation6], 128, 128, 8
    $region9: #{tpu_custom_call.1} parent=1 // pred_fallthru
      _
    // Predicated region
    $region10: #{tpu_custom_call.1} parent=1 // pred_check
      _
    $region11: #{tpu_custom_call.1} parent=1 // pred_check_branch
      %41 = sbr.rel (0) target = $region13
    $region12: #{tpu_custom_call.1} parent=1 // pred_region
      _
    $region13: #{tpu_custom_call.1} parent=1 // pred_fallthru
      _
    // Predicated region
    $region14: #{tpu_custom_call.1} parent=1 // pred_check
      _
    $region15: #{tpu_custom_call.1} parent=1 // pred_check_branch
      %43 = sbr.rel (0) target = $region17
    $region16: #{tpu_custom_call.1} parent=1 // pred_region
      %s45 = ssub.s32 8192, 8192
      %46 = vsyncadd [#allocation6], %s45
      %s47 = sshll.u32 [#allocation7], 4
      %s48 = int_to_ptr.vmem [resolvable:$true] %s47
      %53 = dma.hbm_to_vmem [thread:$0]  %s3, 8192, %s48, [#allocation6], 256, 256, 16
    $region17: #{tpu_custom_call.1} parent=1 // pred_fallthru
      _
    // Predicated region
    $region18: #{tpu_custom_call.1} parent=1 // pred_check
      _
    $region19: #{tpu_custom_call.1} parent=1 // pred_check_branch
      %55 = sbr.rel (0) target = $region21
    $region20: #{tpu_custom_call.1} parent=1 // pred_region
      _
    $region21: #{tpu_custom_call.1} parent=1 // pred_fallthru
      _
    // Predicated region
    $region22: #{tpu_custom_call.1} parent=1 // pred_check
      _
    $region23: #{tpu_custom_call.1} parent=1 // pred_check_branch
      %57 = sbr.rel (0) target = $region25
    $region24: #{tpu_custom_call.1} parent=1 // pred_region
      %s59 = ssub.s32 4096, 4096
      %60 = vsyncadd [#allocation9], %s59
      %s61 = sshll.u32 [#allocation8], 4
      %s62 = int_to_ptr.vmem [resolvable:$true] %s61
      %67 = dma.hbm_to_vmem [thread:$0]  %s5, 4096, %s62, [#allocation9], 64, 64, 4
    $region25: #{tpu_custom_call.1} parent=1 // pred_fallthru
      _
    // Predicated region
    $region26: #{tpu_custom_call.1} parent=1 // pred_check
      _
    $region27: #{tpu_custom_call.1} parent=1 // pred_check_branch
      %69 = sbr.rel (0) target = $region29
    $region28: #{tpu_custom_call.1} parent=1 // pred_region
      _
    $region29: #{tpu_custom_call.1} parent=1 // pred_fallthru
      _
    // Predicated region
    $region30: #{tpu_custom_call.1} parent=1 // pred_check
      _
    $region31: #{tpu_custom_call.1} parent=1 // pred_check_branch
      %71 = sbr.rel (0) target = $region33
    $region32: #{tpu_custom_call.1} parent=1 // pred_region
      %s73 = ssub.s32 1024, 1024
      %74 = vsyncadd [#allocation9], %s73
      %s75 = sshll.u32 [#allocation10], 4
      %s76 = int_to_ptr.vmem [resolvable:$true] %s75
      %81 = dma.hbm_to_vmem [thread:$0]  %s7, 1024, %s76, [#allocation9], 64, 64, 4
    $region33: #{tpu_custom_call.1} parent=1 // pred_fallthru
      _
    // Predicated region
    $region34: #{tpu_custom_call.1} parent=1 // pred_check
      _
    $region35: #{tpu_custom_call.1} parent=1 // pred_check_branch
      %83 = sbr.rel (0) target = $region37
    $region36: #{tpu_custom_call.1} parent=1 // pred_region
      _
    $region37: #{tpu_custom_call.1} parent=1 // pred_fallthru
      _
    // Predicated region
    $region38: #{tpu_custom_call.1} parent=1 // pred_check
      _
    $region39: #{tpu_custom_call.1} parent=1 // pred_check_branch
      %85 = sbr.rel (0) target = $region41
    $region40: #{tpu_custom_call.1} parent=1 // pred_region
      %86 = dma.done [#allocation3], 32
    $region41: #{tpu_custom_call.1} parent=1 // pred_fallthru
      _
    // Predicated region
    $region42: #{tpu_custom_call.1} parent=1 // pred_check
      _
    $region43: #{tpu_custom_call.1} parent=1 // pred_check_branch
      %88 = sbr.rel (0) target = $region45
    $region44: #{tpu_custom_call.1} parent=1 // pred_region
      %89 = dma.done [#allocation6], 256
    $region45: #{tpu_custom_call.1} parent=1 // pred_fallthru
      _
    // Predicated region
    $region46: #{tpu_custom_call.1} parent=1 // pred_check
      _
    $region47: #{tpu_custom_call.1} parent=1 // pred_check_branch
      %91 = sbr.rel (0) target = $region49
    $region48: #{tpu_custom_call.1} parent=1 // pred_region
      %92 = dma.done [#allocation6], 8192
    $region49: #{tpu_custom_call.1} parent=1 // pred_fallthru
      _
    // Predicated region
    $region50: #{tpu_custom_call.1} parent=1 // pred_check
      _
    $region51: #{tpu_custom_call.1} parent=1 // pred_check_branch
      %94 = sbr.rel (0) target = $region53
    $region52: #{tpu_custom_call.1} parent=1 // pred_region
      %95 = dma.done [#allocation9], 4096
    $region53: #{tpu_custom_call.1} parent=1 // pred_fallthru
      _
    // Predicated region
    $region54: #{tpu_custom_call.1} parent=1 // pred_check
      _
    $region55: #{tpu_custom_call.1} parent=1 // pred_check_branch
      %97 = sbr.rel (0) target = $region57
    $region56: #{tpu_custom_call.1} parent=1 // pred_region
      %98 = dma.done [#allocation9], 1024
    $region57: #{tpu_custom_call.1} parent=1 // pred_fallthru
      _
    %v100 = vld [vmem:[#allocation2] sm:$0x3]
    %v101 = vpack.c.bf16 %v100, %v100
    %v102 = vld [vmem:[#allocation5] sm:$0xff]
    %v103 = vld [vmem:[#allocation5 + $0x8] sm:$0xff]
    %v104 = vld [vmem:[%s2] sm:$0x3]
    %v106 = vlaneseq
    %v107 = vshrl.u32 %v106, 7
    %v108 = vsub.s32 0, %v107
    %v109 = vrot.slane %v104, %v108
    %v110 = vlaneseq
    %v111 = vshrl.u32 %v110, 7
    %v112 = vsub.s32 1, %v111
    %v113 = vrot.slane %v104, %v112
    %v118 = vunpack.c.l.b16 %v102
    %v119 = vunpack.c.h.b16 %v102
    %v120 = vunpack.c.l.b16 %v103
    %v121 = vunpack.c.h.b16 %v103
    %v122 = vpack.c.b16 %v120, %v118
    %v123 = vpack.c.b16 %v121, %v119
    %vm126 = vcmask 130048
    %v128 = vsel %vm126, %v101, 0
    %130 = vmatprep.subr.bf16.mxu0 %v123
    %131 = vmatpush1.bf16.msra.mxu0 %v122
    %132 = vmatprep.subr.bf16.mxu0 0
    %133 = vmatpush1.bf16.msra.mxu0 0
    %134 = vmatprep.subr.bf16.mxu0 0
    %135 = vmatpush1.bf16.msra.mxu0 0
    %136 = vmatprep.subr.bf16.mxu0 0
    %137 = vmatpush1.bf16.msra.mxu0 0
    %138 = vmatprep.subr.bf16.mxu0 0
    %139 = vmatpush1.bf16.msra.mxu0 0
    %140 = vmatprep.subr.bf16.mxu0 0
    %141 = vmatpush1.bf16.msra.mxu0 0
    %142 = vmatprep.subr.bf16.mxu0 0
    %143 = vmatpush1.bf16.msra.mxu0 0
    %144 = vmatprep.subr.bf16.mxu0 0
    %145 = vmatpush1.bf16.msra.mxu0 0
    %146 = vmatprep.subr.bf16.mxu0 0
    %147 = vmatpush1.bf16.msra.mxu0 0
    %148 = vmatprep.subr.bf16.mxu0 0
    %149 = vmatpush1.bf16.msra.mxu0 0
    %150 = vmatprep.subr.bf16.mxu0 0
    %151 = vmatpush1.bf16.msra.mxu0 0
    %152 = vmatprep.subr.bf16.mxu0 0
    %153 = vmatpush1.bf16.msra.mxu0 0
    %154 = vmatprep.subr.bf16.mxu0 0
    %155 = vmatpush1.bf16.msra.mxu0 0
    %156 = vmatprep.subr.bf16.mxu0 0
    %157 = vmatpush1.bf16.msra.mxu0 0
    %158 = vmatprep.subr.bf16.mxu0 0
    %159 = vmatpush1.bf16.msra.mxu0 0
    %160 = vmatprep.subr.bf16.mxu0 0
    %161 = vmatpush1.bf16.msra.mxu0 0
    %162 = vmatprep.mubr.bf16.mxu0 0
    %163 = vmatmul.mubr.bf16.gmra.mrb[0].mxu0 %v128
    %v164 = vpop.f32.mrb[0].mxu0
    %v165 = vadd.f32 %v109, %v164
    %v166 = vpop.f32.mrb[0].mxu0
    %v167 = vadd.f32 %v113, %v166
    %v168 = vpop.f32.mrb[0].mxu0
    %v169 = vpop.f32.mrb[0].mxu0
    %170 = vdwg.mxu0
    %v171 = vmax.f32 %v165, 0.0
    %v172 = vmax.f32 %v167, 0.0
    %v173 = vpack.c.bf16 %v171, %v171
    %v174 = vpack.c.bf16 %v172, %v172
    %v175 = vld [vmem:[#allocation7] sm:$0xff]
    %v176 = vld [vmem:[#allocation7 + $0x8] sm:$0xff]
    %v177 = vld [vmem:[#allocation7 + $0x10] sm:$0xff]
    %v178 = vld [vmem:[#allocation7 + $0x18] sm:$0xff]
    %v179 = vld [vmem:[#allocation7 + $0x20] sm:$0xff]
    %v180 = vld [vmem:[#allocation7 + $0x28] sm:$0xff]
    %v181 = vld [vmem:[#allocation7 + $0x30] sm:$0xff]
    %v182 = vld [vmem:[#allocation7 + $0x38] sm:$0xff]
    %v183 = vld [vmem:[#allocation7 + $0x40] sm:$0xff]
    %v184 = vld [vmem:[#allocation7 + $0x48] sm:$0xff]
    %v185 = vld [vmem:[#allocation7 + $0x50] sm:$0xff]
    %v186 = vld [vmem:[#allocation7 + $0x58] sm:$0xff]
    %v187 = vld [vmem:[#allocation7 + $0x60] sm:$0xff]
    %v188 = vld [vmem:[#allocation7 + $0x68] sm:$0xff]
    %v189 = vld [vmem:[#allocation7 + $0x70] sm:$0xff]
    %v190 = vld [vmem:[#allocation7 + $0x78] sm:$0xff]
    %v191 = vld [vmem:[#allocation7 + $0x80] sm:$0xff]
    %v192 = vld [vmem:[#allocation7 + $0x88] sm:$0xff]
    %v193 = vld [vmem:[#allocation7 + $0x90] sm:$0xff]
    %v194 = vld [vmem:[#allocation7 + $0x98] sm:$0xff]
    %v195 = vld [vmem:[#allocation7 + $0xa0] sm:$0xff]
    %v196 = vld [vmem:[#allocation7 + $0xa8] sm:$0xff]
    %v197 = vld [vmem:[#allocation7 + $0xb0] sm:$0xff]
    %v198 = vld [vmem:[#allocation7 + $0xb8] sm:$0xff]
    %v199 = vld [vmem:[#allocation7 + $0xc0] sm:$0xff]
    %v200 = vld [vmem:[#allocation7 + $0xc8] sm:$0xff]
    %v201 = vld [vmem:[#allocation7 + $0xd0] sm:$0xff]
    %v202 = vld [vmem:[#allocation7 + $0xd8] sm:$0xff]
    %v203 = vld [vmem:[#allocation7 + $0xe0] sm:$0xff]
    %v204 = vld [vmem:[#allocation7 + $0xe8] sm:$0xff]
    %v205 = vld [vmem:[#allocation7 + $0xf0] sm:$0xff]
    %v206 = vld [vmem:[#allocation7 + $0xf8] sm:$0xff]
    %v207 = vld [vmem:[#allocation7 + $0x100] sm:$0xff]
    %v208 = vld [vmem:[#allocation7 + $0x108] sm:$0xff]
    %v209 = vld [vmem:[#allocation7 + $0x110] sm:$0xff]
    %v210 = vld [vmem:[#allocation7 + $0x118] sm:$0xff]
    %v211 = vld [vmem:[#allocation7 + $0x120] sm:$0xff]
    %v212 = vld [vmem:[#allocation7 + $0x128] sm:$0xff]
    %v213 = vld [vmem:[#allocation7 + $0x130] sm:$0xff]
    %v214 = vld [vmem:[#allocation7 + $0x138] sm:$0xff]
    %v215 = vld [vmem:[#allocation7 + $0x140] sm:$0xff]
    %v216 = vld [vmem:[#allocation7 + $0x148] sm:$0xff]
    %v217 = vld [vmem:[#allocation7 + $0x150] sm:$0xff]
    %v218 = vld [vmem:[#allocation7 + $0x158] sm:$0xff]
    %v219 = vld [vmem:[#allocation7 + $0x160] sm:$0xff]
    %v220 = vld [vmem:[#allocation7 + $0x168] sm:$0xff]
    %v221 = vld [vmem:[#allocation7 + $0x170] sm:$0xff]
    %v222 = vld [vmem:[#allocation7 + $0x178] sm:$0xff]
    %v223 = vld [vmem:[#allocation7 + $0x180] sm:$0xff]
    %v224 = vld [vmem:[#allocation7 + $0x188] sm:$0xff]
    %v225 = vld [vmem:[#allocation7 + $0x190] sm:$0xff]
    %v226 = vld [vmem:[#allocation7 + $0x198] sm:$0xff]
    %v227 = vld [vmem:[#allocation7 + $0x1a0] sm:$0xff]
    %v228 = vld [vmem:[#allocation7 + $0x1a8] sm:$0xff]
    %v229 = vld [vmem:[#allocation7 + $0x1b0] sm:$0xff]
    %v230 = vld [vmem:[#allocation7 + $0x1b8] sm:$0xff]
    %v231 = vld [vmem:[#allocation7 + $0x1c0] sm:$0xff]
    %v232 = vld [vmem:[#allocation7 + $0x1c8] sm:$0xff]
    %v233 = vld [vmem:[#allocation7 + $0x1d0] sm:$0xff]
    %v234 = vld [vmem:[#allocation7 + $0x1d8] sm:$0xff]
    %v235 = vld [vmem:[#allocation7 + $0x1e0] sm:$0xff]
    %v236 = vld [vmem:[#allocation7 + $0x1e8] sm:$0xff]
    %v237 = vld [vmem:[#allocation7 + $0x1f0] sm:$0xff]
    %v238 = vld [vmem:[#allocation7 + $0x1f8] sm:$0xff]
    %v239 = vld [vmem:[%s4] sm:$0xf]
    %v241 = vlaneseq
    %v242 = vshrl.u32 %v241, 7
    %v243 = vsub.s32 0, %v242
    %v244 = vrot.slane %v239, %v243
    %v245 = vlaneseq
    %v246 = vshrl.u32 %v245, 7
    %v247 = vsub.s32 1, %v246
    %v248 = vrot.slane %v239, %v247
    %v249 = vlaneseq
    %v250 = vshrl.u32 %v249, 7
    %v251 = vsub.s32 2, %v250
    %v252 = vrot.slane %v239, %v251
    %v253 = vlaneseq
    %v254 = vshrl.u32 %v253, 7
    %v255 = vsub.s32 3, %v254
    %v256 = vrot.slane %v239, %v255
    %v325 = vunpack.c.l.b16 %v175
    %v326 = vunpack.c.h.b16 %v175
    %v327 = vunpack.c.l.b16 %v176
    %v328 = vunpack.c.h.b16 %v176
    %v329 = vunpack.c.l.b16 %v177
    %v330 = vunpack.c.h.b16 %v177
    %v331 = vunpack.c.l.b16 %v178
    %v332 = vunpack.c.h.b16 %v178
    %v333 = vunpack.c.l.b16 %v179
    %v334 = vunpack.c.h.b16 %v179
    %v335 = vunpack.c.l.b16 %v180
    %v336 = vunpack.c.h.b16 %v180
    %v337 = vunpack.c.l.b16 %v181
    %v338 = vunpack.c.h.b16 %v181
    %v339 = vunpack.c.l.b16 %v182
    %v340 = vunpack.c.h.b16 %v182
    %v341 = vunpack.c.l.b16 %v183
    %v342 = vunpack.c.h.b16 %v183
    %v343 = vunpack.c.l.b16 %v184
    %v344 = vunpack.c.h.b16 %v184
    %v345 = vunpack.c.l.b16 %v185
    %v346 = vunpack.c.h.b16 %v185
    %v347 = vunpack.c.l.b16 %v186
    %v348 = vunpack.c.h.b16 %v186
    %v349 = vunpack.c.l.b16 %v187
    %v350 = vunpack.c.h.b16 %v187
    %v351 = vunpack.c.l.b16 %v188
    %v352 = vunpack.c.h.b16 %v188
    %v353 = vunpack.c.l.b16 %v189
    %v354 = vunpack.c.h.b16 %v189
    %v355 = vunpack.c.l.b16 %v190
    %v356 = vunpack.c.h.b16 %v190
    %v357 = vunpack.c.l.b16 %v191
    %v358 = vunpack.c.h.b16 %v191
    %v359 = vunpack.c.l.b16 %v192
    %v360 = vunpack.c.h.b16 %v192
    %v361 = vunpack.c.l.b16 %v193
    %v362 = vunpack.c.h.b16 %v193
    %v363 = vunpack.c.l.b16 %v194
    %v364 = vunpack.c.h.b16 %v194
    %v365 = vunpack.c.l.b16 %v195
    %v366 = vunpack.c.h.b16 %v195
    %v367 = vunpack.c.l.b16 %v196
    %v368 = vunpack.c.h.b16 %v196
    %v369 = vunpack.c.l.b16 %v197
    %v370 = vunpack.c.h.b16 %v197
    %v371 = vunpack.c.l.b16 %v198
    %v372 = vunpack.c.h.b16 %v198
    %v373 = vunpack.c.l.b16 %v199
    %v374 = vunpack.c.h.b16 %v199
    %v375 = vunpack.c.l.b16 %v200
    %v376 = vunpack.c.h.b16 %v200
    %v377 = vunpack.c.l.b16 %v201
    %v378 = vunpack.c.h.b16 %v201
    %v379 = vunpack.c.l.b16 %v202
    %v380 = vunpack.c.h.b16 %v202
    %v381 = vunpack.c.l.b16 %v203
    %v382 = vunpack.c.h.b16 %v203
    %v383 = vunpack.c.l.b16 %v204
    %v384 = vunpack.c.h.b16 %v204
    %v385 = vunpack.c.l.b16 %v205
    %v386 = vunpack.c.h.b16 %v205
    %v387 = vunpack.c.l.b16 %v206
    %v388 = vunpack.c.h.b16 %v206
    %v389 = vunpack.c.l.b16 %v207
    %v390 = vunpack.c.h.b16 %v207
    %v391 = vunpack.c.l.b16 %v208
    %v392 = vunpack.c.h.b16 %v208
    %v393 = vunpack.c.l.b16 %v209
    %v394 = vunpack.c.h.b16 %v209
    %v395 = vunpack.c.l.b16 %v210
    %v396 = vunpack.c.h.b16 %v210
    %v397 = vunpack.c.l.b16 %v211
    %v398 = vunpack.c.h.b16 %v211
    %v399 = vunpack.c.l.b16 %v212
    %v400 = vunpack.c.h.b16 %v212
    %v401 = vunpack.c.l.b16 %v213
    %v402 = vunpack.c.h.b16 %v213
    %v403 = vunpack.c.l.b16 %v214
    %v404 = vunpack.c.h.b16 %v214
    %v405 = vunpack.c.l.b16 %v215
    %v406 = vunpack.c.h.b16 %v215
    %v407 = vunpack.c.l.b16 %v216
    %v408 = vunpack.c.h.b16 %v216
    %v409 = vunpack.c.l.b16 %v217
    %v410 = vunpack.c.h.b16 %v217
    %v411 = vunpack.c.l.b16 %v218
    %v412 = vunpack.c.h.b16 %v218
    %v413 = vunpack.c.l.b16 %v219
    %v414 = vunpack.c.h.b16 %v219
    %v415 = vunpack.c.l.b16 %v220
    %v416 = vunpack.c.h.b16 %v220
    %v417 = vunpack.c.l.b16 %v221
    %v418 = vunpack.c.h.b16 %v221
    %v419 = vunpack.c.l.b16 %v222
    %v420 = vunpack.c.h.b16 %v222
    %v421 = vunpack.c.l.b16 %v223
    %v422 = vunpack.c.h.b16 %v223
    %v423 = vunpack.c.l.b16 %v224
    %v424 = vunpack.c.h.b16 %v224
    %v425 = vunpack.c.l.b16 %v225
    %v426 = vunpack.c.h.b16 %v225
    %v427 = vunpack.c.l.b16 %v226
    %v428 = vunpack.c.h.b16 %v226
    %v429 = vunpack.c.l.b16 %v227
    %v430 = vunpack.c.h.b16 %v227
    %v431 = vunpack.c.l.b16 %v228
    %v432 = vunpack.c.h.b16 %v228
    %v433 = vunpack.c.l.b16 %v229
    %v434 = vunpack.c.h.b16 %v229
    %v435 = vunpack.c.l.b16 %v230
    %v436 = vunpack.c.h.b16 %v230
    %v437 = vunpack.c.l.b16 %v231
    %v438 = vunpack.c.h.b16 %v231
    %v439 = vunpack.c.l.b16 %v232
    %v440 = vunpack.c.h.b16 %v232
    %v441 = vunpack.c.l.b16 %v233
    %v442 = vunpack.c.h.b16 %v233
    %v443 = vunpack.c.l.b16 %v234
    %v444 = vunpack.c.h.b16 %v234
    %v445 = vunpack.c.l.b16 %v235
    %v446 = vunpack.c.h.b16 %v235
    %v447 = vunpack.c.l.b16 %v236
    %v448 = vunpack.c.h.b16 %v236
    %v449 = vunpack.c.l.b16 %v237
    %v450 = vunpack.c.h.b16 %v237
    %v451 = vunpack.c.l.b16 %v238
    %v452 = vunpack.c.h.b16 %v238
    %v453 = vpack.c.b16 %v329, %v325
    %v454 = vpack.c.b16 %v330, %v326
    %v455 = vpack.c.b16 %v331, %v327
    %v456 = vpack.c.b16 %v332, %v328
    %v457 = vpack.c.b16 %v337, %v333
    %v458 = vpack.c.b16 %v338, %v334
    %v459 = vpack.c.b16 %v339, %v335
    %v460 = vpack.c.b16 %v340, %v336
    %v461 = vpack.c.b16 %v345, %v341
    %v462 = vpack.c.b16 %v346, %v342
    %v463 = vpack.c.b16 %v347, %v343
    %v464 = vpack.c.b16 %v348, %v344
    %v465 = vpack.c.b16 %v353, %v349
    %v466 = vpack.c.b16 %v354, %v350
    %v467 = vpack.c.b16 %v355, %v351
    %v468 = vpack.c.b16 %v356, %v352
    %v469 = vpack.c.b16 %v361, %v357
    %v470 = vpack.c.b16 %v362, %v358
    %v471 = vpack.c.b16 %v363, %v359
    %v472 = vpack.c.b16 %v364, %v360
    %v473 = vpack.c.b16 %v369, %v365
    %v474 = vpack.c.b16 %v370, %v366
    %v475 = vpack.c.b16 %v371, %v367
    %v476 = vpack.c.b16 %v372, %v368
    %v477 = vpack.c.b16 %v377, %v373
    %v478 = vpack.c.b16 %v378, %v374
    %v479 = vpack.c.b16 %v379, %v375
    %v480 = vpack.c.b16 %v380, %v376
    %v481 = vpack.c.b16 %v385, %v381
    %v482 = vpack.c.b16 %v386, %v382
    %v483 = vpack.c.b16 %v387, %v383
    %v484 = vpack.c.b16 %v388, %v384
    %v485 = vpack.c.b16 %v393, %v389
    %v486 = vpack.c.b16 %v394, %v390
    %v487 = vpack.c.b16 %v395, %v391
    %v488 = vpack.c.b16 %v396, %v392
    %v489 = vpack.c.b16 %v401, %v397
    %v490 = vpack.c.b16 %v402, %v398
    %v491 = vpack.c.b16 %v403, %v399
    %v492 = vpack.c.b16 %v404, %v400
    %v493 = vpack.c.b16 %v409, %v405
    %v494 = vpack.c.b16 %v410, %v406
    %v495 = vpack.c.b16 %v411, %v407
    %v496 = vpack.c.b16 %v412, %v408
    %v497 = vpack.c.b16 %v417, %v413
    %v498 = vpack.c.b16 %v418, %v414
    %v499 = vpack.c.b16 %v419, %v415
    %v500 = vpack.c.b16 %v420, %v416
    %v501 = vpack.c.b16 %v425, %v421
    %v502 = vpack.c.b16 %v426, %v422
    %v503 = vpack.c.b16 %v427, %v423
    %v504 = vpack.c.b16 %v428, %v424
    %v505 = vpack.c.b16 %v433, %v429
    %v506 = vpack.c.b16 %v434, %v430
    %v507 = vpack.c.b16 %v435, %v431
    %v508 = vpack.c.b16 %v436, %v432
    %v509 = vpack.c.b16 %v441, %v437
    %v510 = vpack.c.b16 %v442, %v438
    %v511 = vpack.c.b16 %v443, %v439
    %v512 = vpack.c.b16 %v444, %v440
    %v513 = vpack.c.b16 %v449, %v445
    %v514 = vpack.c.b16 %v450, %v446
    %v515 = vpack.c.b16 %v451, %v447
    %v516 = vpack.c.b16 %v452, %v448
    %581 = vmatprep.subr.bf16.mxu0 %v454
    %582 = vmatpush1.bf16.msra.mxu0 %v453
    %583 = vmatprep.subr.bf16.mxu0 %v458
    %584 = vmatpush1.bf16.msra.mxu0 %v457
    %585 = vmatprep.subr.bf16.mxu0 %v462
    %586 = vmatpush1.bf16.msra.mxu0 %v461
    %587 = vmatprep.subr.bf16.mxu0 %v466
    %588 = vmatpush1.bf16.msra.mxu0 %v465
    %589 = vmatprep.subr.bf16.mxu0 %v470
    %590 = vmatpush1.bf16.msra.mxu0 %v469
    %591 = vmatprep.subr.bf16.mxu0 %v474
    %592 = vmatpush1.bf16.msra.mxu0 %v473
    %593 = vmatprep.subr.bf16.mxu0 %v478
    %594 = vmatpush1.bf16.msra.mxu0 %v477
    %595 = vmatprep.subr.bf16.mxu0 %v482
    %596 = vmatpush1.bf16.msra.mxu0 %v481
    %597 = vmatprep.subr.bf16.mxu0 %v486
    %598 = vmatpush1.bf16.msra.mxu0 %v485
    %599 = vmatprep.subr.bf16.mxu0 %v490
    %600 = vmatpush1.bf16.msra.mxu0 %v489
    %601 = vmatprep.subr.bf16.mxu0 %v494
    %602 = vmatpush1.bf16.msra.mxu0 %v493
    %603 = vmatprep.subr.bf16.mxu0 %v498
    %604 = vmatpush1.bf16.msra.mxu0 %v497
    %605 = vmatprep.subr.bf16.mxu0 %v502
    %606 = vmatpush1.bf16.msra.mxu0 %v501
    %607 = vmatprep.subr.bf16.mxu0 %v506
    %608 = vmatpush1.bf16.msra.mxu0 %v505
    %609 = vmatprep.subr.bf16.mxu0 %v510
    %610 = vmatpush1.bf16.msra.mxu0 %v509
    %611 = vmatprep.subr.bf16.mxu0 %v514
    %612 = vmatpush1.bf16.msra.mxu0 %v513
    %613 = vmatprep.mubr.bf16.mxu0 %v174
    %614 = vmatmul.mubr.bf16.gmra.mrb[0].mxu0 %v173
    %v615 = vpop.f32.mrb[0].mxu0
    %v616 = vadd.f32 %v244, %v615
    %v617 = vpop.f32.mrb[0].mxu0
    %v618 = vadd.f32 %v248, %v617
    %v619 = vpop.f32.mrb[0].mxu0
    %v620 = vpop.f32.mrb[0].mxu0
    %621 = vdwg.mxu0
    %622 = vmatprep.subr.bf16.mxu0 %v456
    %623 = vmatpush1.bf16.msra.mxu0 %v455
    %624 = vmatprep.subr.bf16.mxu0 %v460
    %625 = vmatpush1.bf16.msra.mxu0 %v459
    %626 = vmatprep.subr.bf16.mxu0 %v464
    %627 = vmatpush1.bf16.msra.mxu0 %v463
    %628 = vmatprep.subr.bf16.mxu0 %v468
    %629 = vmatpush1.bf16.msra.mxu0 %v467
    %630 = vmatprep.subr.bf16.mxu0 %v472
    %631 = vmatpush1.bf16.msra.mxu0 %v471
    %632 = vmatprep.subr.bf16.mxu0 %v476
    %633 = vmatpush1.bf16.msra.mxu0 %v475
    %634 = vmatprep.subr.bf16.mxu0 %v480
    %635 = vmatpush1.bf16.msra.mxu0 %v479
    %636 = vmatprep.subr.bf16.mxu0 %v484
    %637 = vmatpush1.bf16.msra.mxu0 %v483
    %638 = vmatprep.subr.bf16.mxu0 %v488
    %639 = vmatpush1.bf16.msra.mxu0 %v487
    %640 = vmatprep.subr.bf16.mxu0 %v492
    %641 = vmatpush1.bf16.msra.mxu0 %v491
    %642 = vmatprep.subr.bf16.mxu0 %v496
    %643 = vmatpush1.bf16.msra.mxu0 %v495
    %644 = vmatprep.subr.bf16.mxu0 %v500
    %645 = vmatpush1.bf16.msra.mxu0 %v499
    %646 = vmatprep.subr.bf16.mxu0 %v504
    %647 = vmatpush1.bf16.msra.mxu0 %v503
    %648 = vmatprep.subr.bf16.mxu0 %v508
    %649 = vmatpush1.bf16.msra.mxu0 %v507
    %650 = vmatprep.subr.bf16.mxu0 %v512
    %651 = vmatpush1.bf16.msra.mxu0 %v511
    %652 = vmatprep.subr.bf16.mxu0 %v516
    %653 = vmatpush1.bf16.msra.mxu0 %v515
    %654 = vmatprep.mubr.bf16.mxu0 %v174
    %655 = vmatmul.mubr.bf16.gmra.mrb[0].mxu0 %v173
    %v656 = vpop.f32.mrb[0].mxu0
    %v657 = vadd.f32 %v252, %v656
    %v658 = vpop.f32.mrb[0].mxu0
    %v659 = vadd.f32 %v256, %v658
    %v660 = vpop.f32.mrb[0].mxu0
    %v661 = vpop.f32.mrb[0].mxu0
    %662 = vdwg.mxu0
    %v663 = vmax.f32 %v616, 0.0
    %v664 = vmax.f32 %v618, 0.0
    %v665 = vmax.f32 %v657, 0.0
    %v666 = vmax.f32 %v659, 0.0
    %v667 = vpack.c.bf16 %v663, %v663
    %v668 = vpack.c.bf16 %v664, %v664
    %v669 = vpack.c.bf16 %v665, %v665
    %v670 = vpack.c.bf16 %v666, %v666
    %v671 = vld [vmem:[#allocation8] sm:$0xf]
    %v672 = vld [vmem:[#allocation8 + $0x4] sm:$0xf]
    %v673 = vld [vmem:[#allocation8 + $0x8] sm:$0xf]
    %v674 = vld [vmem:[#allocation8 + $0xc] sm:$0xf]
    %v675 = vld [vmem:[#allocation8 + $0x10] sm:$0xf]
    %v676 = vld [vmem:[#allocation8 + $0x14] sm:$0xf]
    %v677 = vld [vmem:[#allocation8 + $0x18] sm:$0xf]
    %v678 = vld [vmem:[#allocation8 + $0x1c] sm:$0xf]
    %v679 = vld [vmem:[#allocation8 + $0x20] sm:$0xf]
    %v680 = vld [vmem:[#allocation8 + $0x24] sm:$0xf]
    %v681 = vld [vmem:[#allocation8 + $0x28] sm:$0xf]
    %v682 = vld [vmem:[#allocation8 + $0x2c] sm:$0xf]
    %v683 = vld [vmem:[#allocation8 + $0x30] sm:$0xf]
    %v684 = vld [vmem:[#allocation8 + $0x34] sm:$0xf]
    %v685 = vld [vmem:[#allocation8 + $0x38] sm:$0xf]
    %v686 = vld [vmem:[#allocation8 + $0x3c] sm:$0xf]
    %v687 = vld [vmem:[#allocation8 + $0x40] sm:$0xf]
    %v688 = vld [vmem:[#allocation8 + $0x44] sm:$0xf]
    %v689 = vld [vmem:[#allocation8 + $0x48] sm:$0xf]
    %v690 = vld [vmem:[#allocation8 + $0x4c] sm:$0xf]
    %v691 = vld [vmem:[#allocation8 + $0x50] sm:$0xf]
    %v692 = vld [vmem:[#allocation8 + $0x54] sm:$0xf]
    %v693 = vld [vmem:[#allocation8 + $0x58] sm:$0xf]
    %v694 = vld [vmem:[#allocation8 + $0x5c] sm:$0xf]
    %v695 = vld [vmem:[#allocation8 + $0x60] sm:$0xf]
    %v696 = vld [vmem:[#allocation8 + $0x64] sm:$0xf]
    %v697 = vld [vmem:[#allocation8 + $0x68] sm:$0xf]
    %v698 = vld [vmem:[#allocation8 + $0x6c] sm:$0xf]
    %v699 = vld [vmem:[#allocation8 + $0x70] sm:$0xf]
    %v700 = vld [vmem:[#allocation8 + $0x74] sm:$0xf]
    %v701 = vld [vmem:[#allocation8 + $0x78] sm:$0xf]
    %v702 = vld [vmem:[#allocation8 + $0x7c] sm:$0xf]
    %v703 = vld [vmem:[#allocation8 + $0x80] sm:$0xf]
    %v704 = vld [vmem:[#allocation8 + $0x84] sm:$0xf]
    %v705 = vld [vmem:[#allocation8 + $0x88] sm:$0xf]
    %v706 = vld [vmem:[#allocation8 + $0x8c] sm:$0xf]
    %v707 = vld [vmem:[#allocation8 + $0x90] sm:$0xf]
    %v708 = vld [vmem:[#allocation8 + $0x94] sm:$0xf]
    %v709 = vld [vmem:[#allocation8 + $0x98] sm:$0xf]
    %v710 = vld [vmem:[#allocation8 + $0x9c] sm:$0xf]
    %v711 = vld [vmem:[#allocation8 + $0xa0] sm:$0xf]
    %v712 = vld [vmem:[#allocation8 + $0xa4] sm:$0xf]
    %v713 = vld [vmem:[#allocation8 + $0xa8] sm:$0xf]
    %v714 = vld [vmem:[#allocation8 + $0xac] sm:$0xf]
    %v715 = vld [vmem:[#allocation8 + $0xb0] sm:$0xf]
    %v716 = vld [vmem:[#allocation8 + $0xb4] sm:$0xf]
    %v717 = vld [vmem:[#allocation8 + $0xb8] sm:$0xf]
    %v718 = vld [vmem:[#allocation8 + $0xbc] sm:$0xf]
    %v719 = vld [vmem:[#allocation8 + $0xc0] sm:$0xf]
    %v720 = vld [vmem:[#allocation8 + $0xc4] sm:$0xf]
    %v721 = vld [vmem:[#allocation8 + $0xc8] sm:$0xf]
    %v722 = vld [vmem:[#allocation8 + $0xcc] sm:$0xf]
    %v723 = vld [vmem:[#allocation8 + $0xd0] sm:$0xf]
    %v724 = vld [vmem:[#allocation8 + $0xd4] sm:$0xf]
    %v725 = vld [vmem:[#allocation8 + $0xd8] sm:$0xf]
    %v726 = vld [vmem:[#allocation8 + $0xdc] sm:$0xf]
    %v727 = vld [vmem:[#allocation8 + $0xe0] sm:$0xf]
    %v728 = vld [vmem:[#allocation8 + $0xe4] sm:$0xf]
    %v729 = vld [vmem:[#allocation8 + $0xe8] sm:$0xf]
    %v730 = vld [vmem:[#allocation8 + $0xec] sm:$0xf]
    %v731 = vld [vmem:[#allocation8 + $0xf0] sm:$0xf]
    %v732 = vld [vmem:[#allocation8 + $0xf4] sm:$0xf]
    %v733 = vld [vmem:[#allocation8 + $0xf8] sm:$0xf]
    %v734 = vld [vmem:[#allocation8 + $0xfc] sm:$0xf]
    %v735 = vld [vmem:[%s6] sm:$0x1]
    %v737 = vlaneseq
    %v738 = vshrl.u32 %v737, 7
    %v739 = vsub.s32 0, %v738
    %v740 = vrot.slane %v735, %v739
    %v806 = vunpack.c.l.b16 %v671
    %v807 = vunpack.c.l.b16 %v672
    %v808 = vunpack.c.l.b16 %v673
    %v809 = vunpack.c.l.b16 %v674
    %v810 = vunpack.c.l.b16 %v675
    %v811 = vunpack.c.l.b16 %v676
    %v812 = vunpack.c.l.b16 %v677
    %v813 = vunpack.c.l.b16 %v678
    %v814 = vunpack.c.l.b16 %v679
    %v815 = vunpack.c.l.b16 %v680
    %v816 = vunpack.c.l.b16 %v681
    %v817 = vunpack.c.l.b16 %v682
    %v818 = vunpack.c.l.b16 %v683
    %v819 = vunpack.c.l.b16 %v684
    %v820 = vunpack.c.l.b16 %v685
    %v821 = vunpack.c.l.b16 %v686
    %v822 = vunpack.c.l.b16 %v687
    %v823 = vunpack.c.l.b16 %v688
    %v824 = vunpack.c.l.b16 %v689
    %v825 = vunpack.c.l.b16 %v690
    %v826 = vunpack.c.l.b16 %v691
    %v827 = vunpack.c.l.b16 %v692
    %v828 = vunpack.c.l.b16 %v693
    %v829 = vunpack.c.l.b16 %v694
    %v830 = vunpack.c.l.b16 %v695
    %v831 = vunpack.c.l.b16 %v696
    %v832 = vunpack.c.l.b16 %v697
    %v833 = vunpack.c.l.b16 %v698
    %v834 = vunpack.c.l.b16 %v699
    %v835 = vunpack.c.l.b16 %v700
    %v836 = vunpack.c.l.b16 %v701
    %v837 = vunpack.c.l.b16 %v702
    %v838 = vunpack.c.l.b16 %v703
    %v839 = vunpack.c.l.b16 %v704
    %v840 = vunpack.c.l.b16 %v705
    %v841 = vunpack.c.l.b16 %v706
    %v842 = vunpack.c.l.b16 %v707
    %v843 = vunpack.c.l.b16 %v708
    %v844 = vunpack.c.l.b16 %v709
    %v845 = vunpack.c.l.b16 %v710
    %v846 = vunpack.c.l.b16 %v711
    %v847 = vunpack.c.l.b16 %v712
    %v848 = vunpack.c.l.b16 %v713
    %v849 = vunpack.c.l.b16 %v714
    %v850 = vunpack.c.l.b16 %v715
    %v851 = vunpack.c.l.b16 %v716
    %v852 = vunpack.c.l.b16 %v717
    %v853 = vunpack.c.l.b16 %v718
    %v854 = vunpack.c.l.b16 %v719
    %v855 = vunpack.c.l.b16 %v720
    %v856 = vunpack.c.l.b16 %v721
    %v857 = vunpack.c.l.b16 %v722
    %v858 = vunpack.c.l.b16 %v723
    %v859 = vunpack.c.l.b16 %v724
    %v860 = vunpack.c.l.b16 %v725
    %v861 = vunpack.c.l.b16 %v726
    %v862 = vunpack.c.l.b16 %v727
    %v863 = vunpack.c.l.b16 %v728
    %v864 = vunpack.c.l.b16 %v729
    %v865 = vunpack.c.l.b16 %v730
    %v866 = vunpack.c.l.b16 %v731
    %v867 = vunpack.c.l.b16 %v732
    %v868 = vunpack.c.l.b16 %v733
    %v869 = vunpack.c.l.b16 %v734
    %v870 = vpack.c.b16 %v807, %v806
    %v871 = vpack.c.b16 %v809, %v808
    %v872 = vpack.c.b16 %v811, %v810
    %v873 = vpack.c.b16 %v813, %v812
    %v874 = vpack.c.b16 %v815, %v814
    %v875 = vpack.c.b16 %v817, %v816
    %v876 = vpack.c.b16 %v819, %v818
    %v877 = vpack.c.b16 %v821, %v820
    %v878 = vpack.c.b16 %v823, %v822
    %v879 = vpack.c.b16 %v825, %v824
    %v880 = vpack.c.b16 %v827, %v826
    %v881 = vpack.c.b16 %v829, %v828
    %v882 = vpack.c.b16 %v831, %v830
    %v883 = vpack.c.b16 %v833, %v832
    %v884 = vpack.c.b16 %v835, %v834
    %v885 = vpack.c.b16 %v837, %v836
    %v886 = vpack.c.b16 %v839, %v838
    %v887 = vpack.c.b16 %v841, %v840
    %v888 = vpack.c.b16 %v843, %v842
    %v889 = vpack.c.b16 %v845, %v844
    %v890 = vpack.c.b16 %v847, %v846
    %v891 = vpack.c.b16 %v849, %v848
    %v892 = vpack.c.b16 %v851, %v850
    %v893 = vpack.c.b16 %v853, %v852
    %v894 = vpack.c.b16 %v855, %v854
    %v895 = vpack.c.b16 %v857, %v856
    %v896 = vpack.c.b16 %v859, %v858
    %v897 = vpack.c.b16 %v861, %v860
    %v898 = vpack.c.b16 %v863, %v862
    %v899 = vpack.c.b16 %v865, %v864
    %v900 = vpack.c.b16 %v867, %v866
    %v901 = vpack.c.b16 %v869, %v868
    %934 = vmatprep.subr.bf16.mxu0 0
    %935 = vmatpush1.bf16.msra.mxu0 %v870
    %936 = vmatprep.subr.bf16.mxu0 0
    %937 = vmatpush1.bf16.msra.mxu0 %v871
    %938 = vmatprep.subr.bf16.mxu0 0
    %939 = vmatpush1.bf16.msra.mxu0 %v872
    %940 = vmatprep.subr.bf16.mxu0 0
    %941 = vmatpush1.bf16.msra.mxu0 %v873
    %942 = vmatprep.subr.bf16.mxu0 0
    %943 = vmatpush1.bf16.msra.mxu0 %v874
    %944 = vmatprep.subr.bf16.mxu0 0
    %945 = vmatpush1.bf16.msra.mxu0 %v875
    %946 = vmatprep.subr.bf16.mxu0 0
    %947 = vmatpush1.bf16.msra.mxu0 %v876
    %948 = vmatprep.subr.bf16.mxu0 0
    %949 = vmatpush1.bf16.msra.mxu0 %v877
    %950 = vmatprep.subr.bf16.mxu0 0
    %951 = vmatpush1.bf16.msra.mxu0 %v878
    %952 = vmatprep.subr.bf16.mxu0 0
    %953 = vmatpush1.bf16.msra.mxu0 %v879
    %954 = vmatprep.subr.bf16.mxu0 0
    %955 = vmatpush1.bf16.msra.mxu0 %v880
    %956 = vmatprep.subr.bf16.mxu0 0
    %957 = vmatpush1.bf16.msra.mxu0 %v881
    %958 = vmatprep.subr.bf16.mxu0 0
    %959 = vmatpush1.bf16.msra.mxu0 %v882
    %960 = vmatprep.subr.bf16.mxu0 0
    %961 = vmatpush1.bf16.msra.mxu0 %v883
    %962 = vmatprep.subr.bf16.mxu0 0
    %963 = vmatpush1.bf16.msra.mxu0 %v884
    %964 = vmatprep.subr.bf16.mxu0 0
    %965 = vmatpush1.bf16.msra.mxu0 %v885
    %966 = vmatprep.mubr.bf16.mxu0 %v668
    %967 = vmatmul.mubr.bf16.gmra.mrb[0].mxu0 %v667
    %v968 = vpop.f32.mrb[0].mxu0
    %v969 = vadd.f32 %v740, %v968
    %v970 = vpop.f32.mrb[0].mxu0
    %v971 = vpop.f32.mrb[0].mxu0
    %v972 = vpop.f32.mrb[0].mxu0
    %973 = vdwg.mxu0
    %974 = vmatprep.subr.bf16.mxu0 0
    %975 = vmatpush1.bf16.msra.mxu0 %v886
    %976 = vmatprep.subr.bf16.mxu0 0
    %977 = vmatpush1.bf16.msra.mxu0 %v887
    %978 = vmatprep.subr.bf16.mxu0 0
    %979 = vmatpush1.bf16.msra.mxu0 %v888
    %980 = vmatprep.subr.bf16.mxu0 0
    %981 = vmatpush1.bf16.msra.mxu0 %v889
    %982 = vmatprep.subr.bf16.mxu0 0
    %983 = vmatpush1.bf16.msra.mxu0 %v890
    %984 = vmatprep.subr.bf16.mxu0 0
    %985 = vmatpush1.bf16.msra.mxu0 %v891
    %986 = vmatprep.subr.bf16.mxu0 0
    %987 = vmatpush1.bf16.msra.mxu0 %v892
    %988 = vmatprep.subr.bf16.mxu0 0
    %989 = vmatpush1.bf16.msra.mxu0 %v893
    %990 = vmatprep.subr.bf16.mxu0 0
    %991 = vmatpush1.bf16.msra.mxu0 %v894
    %992 = vmatprep.subr.bf16.mxu0 0
    %993 = vmatpush1.bf16.msra.mxu0 %v895
    %994 = vmatprep.subr.bf16.mxu0 0
    %995 = vmatpush1.bf16.msra.mxu0 %v896
    %996 = vmatprep.subr.bf16.mxu0 0
    %997 = vmatpush1.bf16.msra.mxu0 %v897
    %998 = vmatprep.subr.bf16.mxu0 0
    %999 = vmatpush1.bf16.msra.mxu0 %v898
    %1000 = vmatprep.subr.bf16.mxu0 0
    %1001 = vmatpush1.bf16.msra.mxu0 %v899
    %1002 = vmatprep.subr.bf16.mxu0 0
    %1003 = vmatpush1.bf16.msra.mxu0 %v900
    %1004 = vmatprep.subr.bf16.mxu0 0
    %1005 = vmatpush1.bf16.msra.mxu0 %v901
    %1006 = vmatprep.mubr.bf16.mxu0 %v670
    %1007 = vmatmul.mubr.bf16.gmra.mrb[0].mxu0 %v669
    %v1008 = vpop.f32.mrb[0].mxu0
    %v1009 = vadd.f32 %v969, %v1008
    %v1010 = vpop.f32.mrb[0].mxu0
    %v1011 = vpop.f32.mrb[0].mxu0
    %v1012 = vpop.f32.mrb[0].mxu0
    %1013 = vdwg.mxu0
    %v1014 = vmax.f32 %v1009, 0.0
    %v1015 = vpack.c.bf16 %v1014, %v1014
    %v1016 = vld [vmem:[#allocation10] sm:$0xf]
    %v1017 = vld [vmem:[#allocation10 + $0x4] sm:$0xf]
    %v1018 = vld [vmem:[#allocation10 + $0x8] sm:$0xf]
    %v1019 = vld [vmem:[#allocation10 + $0xc] sm:$0xf]
    %v1020 = vld [vmem:[#allocation10 + $0x10] sm:$0xf]
    %v1021 = vld [vmem:[#allocation10 + $0x14] sm:$0xf]
    %v1022 = vld [vmem:[#allocation10 + $0x18] sm:$0xf]
    %v1023 = vld [vmem:[#allocation10 + $0x1c] sm:$0xf]
    %v1024 = vld [vmem:[#allocation10 + $0x20] sm:$0xf]
    %v1025 = vld [vmem:[#allocation10 + $0x24] sm:$0xf]
    %v1026 = vld [vmem:[#allocation10 + $0x28] sm:$0xf]
    %v1027 = vld [vmem:[#allocation10 + $0x2c] sm:$0xf]
    %v1028 = vld [vmem:[#allocation10 + $0x30] sm:$0xf]
    %v1029 = vld [vmem:[#allocation10 + $0x34] sm:$0xf]
    %v1030 = vld [vmem:[#allocation10 + $0x38] sm:$0xf]
    %v1031 = vld [vmem:[#allocation10 + $0x3c] sm:$0xf]
    %v1032 = vld [vmem:[%s8] sm:$0x1]
    %v1034 = vlaneseq
    %v1035 = vshrl.u32 %v1034, 7
    %v1036 = vsub.s32 0, %v1035
    %v1037 = vrot.slane %v1032, %v1036
    %v1055 = vunpack.c.l.b16 %v1016
    %v1056 = vunpack.c.l.b16 %v1017
    %v1057 = vunpack.c.l.b16 %v1018
    %v1058 = vunpack.c.l.b16 %v1019
    %v1059 = vunpack.c.l.b16 %v1020
    %v1060 = vunpack.c.l.b16 %v1021
    %v1061 = vunpack.c.l.b16 %v1022
    %v1062 = vunpack.c.l.b16 %v1023
    %v1063 = vunpack.c.l.b16 %v1024
    %v1064 = vunpack.c.l.b16 %v1025
    %v1065 = vunpack.c.l.b16 %v1026
    %v1066 = vunpack.c.l.b16 %v1027
    %v1067 = vunpack.c.l.b16 %v1028
    %v1068 = vunpack.c.l.b16 %v1029
    %v1069 = vunpack.c.l.b16 %v1030
    %v1070 = vunpack.c.l.b16 %v1031
    %v1071 = vpack.c.b16 %v1056, %v1055
    %v1072 = vpack.c.b16 %v1058, %v1057
    %v1073 = vpack.c.b16 %v1060, %v1059
    %v1074 = vpack.c.b16 %v1062, %v1061
    %v1075 = vpack.c.b16 %v1064, %v1063
    %v1076 = vpack.c.b16 %v1066, %v1065
    %v1077 = vpack.c.b16 %v1068, %v1067
    %v1078 = vpack.c.b16 %v1070, %v1069
    %1087 = vmatprep.subr.bf16.mxu0 0
    %1088 = vmatpush1.bf16.msra.mxu0 %v1071
    %1089 = vmatprep.subr.bf16.mxu0 0
    %1090 = vmatpush1.bf16.msra.mxu0 %v1072
    %1091 = vmatprep.subr.bf16.mxu0 0
    %1092 = vmatpush1.bf16.msra.mxu0 %v1073
    %1093 = vmatprep.subr.bf16.mxu0 0
    %1094 = vmatpush1.bf16.msra.mxu0 %v1074
    %1095 = vmatprep.subr.bf16.mxu0 0
    %1096 = vmatpush1.bf16.msra.mxu0 %v1075
    %1097 = vmatprep.subr.bf16.mxu0 0
    %1098 = vmatpush1.bf16.msra.mxu0 %v1076
    %1099 = vmatprep.subr.bf16.mxu0 0
    %1100 = vmatpush1.bf16.msra.mxu0 %v1077
    %1101 = vmatprep.subr.bf16.mxu0 0
    %1102 = vmatpush1.bf16.msra.mxu0 %v1078
    %1103 = vmatprep.subr.bf16.mxu0 0
    %1104 = vmatpush1.bf16.msra.mxu0 0
    %1105 = vmatprep.subr.bf16.mxu0 0
    %1106 = vmatpush1.bf16.msra.mxu0 0
    %1107 = vmatprep.subr.bf16.mxu0 0
    %1108 = vmatpush1.bf16.msra.mxu0 0
    %1109 = vmatprep.subr.bf16.mxu0 0
    %1110 = vmatpush1.bf16.msra.mxu0 0
    %1111 = vmatprep.subr.bf16.mxu0 0
    %1112 = vmatpush1.bf16.msra.mxu0 0
    %1113 = vmatprep.subr.bf16.mxu0 0
    %1114 = vmatpush1.bf16.msra.mxu0 0
    %1115 = vmatprep.subr.bf16.mxu0 0
    %1116 = vmatpush1.bf16.msra.mxu0 0
    %1117 = vmatprep.subr.bf16.mxu0 0
    %1118 = vmatpush1.bf16.msra.mxu0 0
    %1119 = vmatprep.mubr.bf16.mxu0 0
    %1120 = vmatmul.mubr.bf16.gmra.mrb[0].mxu0 %v1015
    %v1121 = vpop.f32.mrb[0].mxu0
    %v1122 = vadd.f32 %v1037, %v1121
    %v1123 = vpop.f32.mrb[0].mxu0
    %v1124 = vpop.f32.mrb[0].mxu0
    %v1125 = vpop.f32.mrb[0].mxu0
    %1126 = vdwg.mxu0
    %1127 = vst [vmem:[#allocation11] sm:$0x3] %v1122
    // Predicated region
    $region58: #{tpu_custom_call.1} parent=1 // pred_check
      _
    $region59: #{tpu_custom_call.1} parent=1 // pred_check_branch
      %1129 = sbr.rel (0) target = $region61
    $region60: #{tpu_custom_call.1} parent=1 // pred_region
      %s1131 = ssub.s32 32, 32
      %1132 = vsyncadd [#allocation4], %s1131
      %s1134 = sshll.u32 [#allocation11], 4
      %s1135 = int_to_ptr.vmem [resolvable:$true] %s1134
      %1137 = dma.vmem_to_hbm [thread:$0]  %s1135, 32, %s9, [#allocation4]
    $region61: #{tpu_custom_call.1} parent=1 // pred_fallthru
      _
    // Predicated region
    $region62: #{tpu_custom_call.1} parent=1 // pred_check
      _
    $region63: #{tpu_custom_call.1} parent=1 // pred_check_branch
      %1139 = sbr.rel (0) target = $region65
    $region64: #{tpu_custom_call.1} parent=1 // pred_region
      %1140 = dma.done [#allocation4], 32
    $region65: #{tpu_custom_call.1} parent=1 // pred_fallthru
      _
    %1141 = vsyncpa [#allocation3], 1
    %1142 = vsyncpa [#allocation6], 1
    %1143 = vsyncpa [#allocation9], 1
    %1144 = vsyncpa [#allocation4], 1

</llo_original>
